<compile_context>
chip_gen: v5e
topology: v5e:2x2
jax: 0.10.0
libtpu: 0.0.40
codegen_flags: <defaults>
</compile_context>

<pallas_src>
import functools
import math

import jax
import jax.numpy as jnp
from jax import lax
from jax.experimental import pallas as pl
from jax.experimental.pallas import tpu as pltpu

_INV_SQRT2 = 1.0 / math.sqrt(2.0)


def _mlp_block_kernel(x_ref, w1_ref, b1_ref, w2_ref, b2_ref, o_ref, acc_ref,
                      *, precision):
    # x_ref: (TM, H)   w1_ref: (H, TD)   b1_ref: (1, TD) f32
    # w2_ref: (TD, H)  b2_ref: (1, H) f32
    # o_ref: (TM, H)   acc_ref: (TM, H) f32 scratch
    k = pl.program_id(1)

    @pl.when(k == 0)
    def _():
        acc_ref[...] = jnp.zeros_like(acc_ref)

    # First linear (this mlp_dim chunk) on the MXU, f32 accumulation.
    h = jnp.dot(x_ref[...], w1_ref[...],
                preferred_element_type=jnp.float32, precision=precision)
    h = h + b1_ref[...]

    # Exact GELU (matches nn.GELU() default, approximate='none').
    h = 0.5 * h * (1.0 + lax.erf(h * _INV_SQRT2))

    # Second linear: cast the chunk back to the weight dtype (full MXU rate
    # for bf16 models) and accumulate into the resident f32 output tile.
    acc_ref[...] += jnp.dot(h.astype(w2_ref.dtype), w2_ref[...],
                            preferred_element_type=jnp.float32,
                            precision=precision)

    @pl.when(k == pl.num_programs(1) - 1)
    def _():
        o_ref[...] = (acc_ref[...] + b2_ref[...]).astype(o_ref.dtype)


def _round_up(v, n):
    return ((v + n - 1) // n) * n


def _pick_tile_d(mlp_dim, hidden_dim, w_itemsize, chunk_budget_bytes=4 << 20):
    """Largest 128-multiple divisor of mlp_dim whose (H, tile_d) weight chunk
    fits the per-buffer budget; falls back to the full mlp_dim."""
    if mlp_dim % 128 != 0:
        # TODO(synk): support ragged reduction chunks (needs masking of the
        # out-of-range mlp_dim columns); keep the full dim resident for now.
        return mlp_dim
    max_d = max(128, chunk_budget_bytes // max(1, hidden_dim * w_itemsize))
    d = (min(mlp_dim, max_d) // 128) * 128
    while d >= 128:
        if mlp_dim % d == 0:
            return d
        d -= 128
    return mlp_dim


def _sanitize_tile_d(tile_d, mlp_dim):
    if tile_d is None:
        return None
    tile_d = int(tile_d)
    if tile_d >= mlp_dim:
        return mlp_dim
    if tile_d % 128 == 0 and mlp_dim % tile_d == 0:
        return tile_d
    return mlp_dim  # invalid request -> no chunking (always correct)


def mlp_block(x, w1, b1, w2, b2, *, tile_m=None, tile_d=None, precision=None):
    """MLP-Mixer MlpBlock forward. x: (..., hidden_dim); returns same shape/dtype.

    Weights are stored pre-transposed vs. nn.Linear: w1 (H, D), w2 (D, H).
    `precision` is forwarded to the MXU dots (None = TPU default; pass
    jax.lax.Precision.HIGHEST for strict f32 fidelity on f32 models).
    """
    hidden_dim = x.shape[-1]
    mlp_dim = w1.shape[-1]
    assert w1.shape == (hidden_dim, mlp_dim)
    assert b1.shape == (mlp_dim,)
    assert w2.shape == (mlp_dim, hidden_dim)
    assert b2.shape == (hidden_dim,)

    lead_shape = x.shape[:-1]
    m = math.prod(lead_shape) if lead_shape else 1
    x2 = x.reshape(m, hidden_dim)

    x_itemsize = jnp.dtype(x.dtype).itemsize
    w_itemsize = jnp.dtype(w1.dtype).itemsize
    sublane = 16 if x.dtype == jnp.bfloat16 else 8

    # --- Row tile: grow to 512 (f32) / 1024 (bf16) for large M, but keep
    # >= 2 row tiles whenever enough rows exist so both v7x TCs get work.
    if tile_m is None:
        target = 1024 if sublane == 16 else 512
        if m > sublane:
            half = _round_up(pl.cdiv(m, 2), sublane)
        else:
            half = _round_up(max(m, 1), sublane)
        tile_m = max(sublane, min(target, half))
    else:
        tile_m = max(sublane, _round_up(int(tile_m), sublane))
        tile_m = min(tile_m, _round_up(m, sublane))
    num_m = pl.cdiv(m, tile_m)

    # --- Reduction (mlp_dim) chunk: stream W1/W2 instead of keeping resident.
    tile_d = _sanitize_tile_d(tile_d, mlp_dim)
    if tile_d is None:
        tile_d = _pick_tile_d(mlp_dim, hidden_dim, w_itemsize)
    num_d = mlp_dim // tile_d

    # Biases as f32 row vectors (cast once in the wrapper, not per grid step).
    b1_2d = b1.reshape(1, mlp_dim).astype(jnp.float32)
    b2_2d = b2.reshape(1, hidden_dim).astype(jnp.float32)

    grid = (num_m, num_d)

    # --- VMEM budget: per-step working set (double-buffered inputs/outputs,
    # f32 accumulator + intermediate), capped at ~75% of physical VMEM.
    per_step = (
        2 * tile_m * hidden_dim * x_itemsize          # x tile (double-buffered)
        + 2 * tile_m * hidden_dim * x_itemsize        # out tile
        + tile_m * hidden_dim * 4                     # f32 accumulator scratch
        + 2 * hidden_dim * tile_d * w_itemsize        # W1 chunk
        + 2 * tile_d * hidden_dim * w_itemsize        # W2 chunk
        + 2 * (tile_d + hidden_dim) * 4               # bias chunks (f32)
        + 2 * tile_m * tile_d * 4                     # live h chunk (+ cast copy)
    )
    try:
        info = pltpu.get_tpu_info()
        vmem_cap = int(getattr(info, "vmem_capacity_bytes", 64 * 1024 * 1024))
    except Exception:
        vmem_cap = 64 * 1024 * 1024                   # conservative (v7x per-TC)
    vmem_cap = (3 * vmem_cap) // 4                    # headroom for Mosaic scratch
    vmem_limit = int(min(max(int(1.5 * per_step), 32 * 1024 * 1024), vmem_cap))

    weight_bytes = ((hidden_dim * mlp_dim + mlp_dim * hidden_dim) * w_itemsize
                    + (mlp_dim + hidden_dim) * 4)
    cost = pl.CostEstimate(
        flops=4 * m * hidden_dim * mlp_dim,
        transcendentals=m * mlp_dim,
        bytes_accessed=(m * hidden_dim * x_itemsize          # x read
                        + m * hidden_dim * x_itemsize        # out write
                        + num_m * weight_bytes),             # weights per row tile
    )

    kernel = functools.partial(_mlp_block_kernel, precision=precision)

    out = pl.pallas_call(
        kernel,
        out_shape=jax.ShapeDtypeStruct((m, hidden_dim), x.dtype),
        grid_spec=pltpu.PrefetchScalarGridSpec(
            num_scalar_prefetch=0,
            grid=grid,
            in_specs=[
                pl.BlockSpec((tile_m, hidden_dim), lambda i, k: (i, 0)),
                pl.BlockSpec((hidden_dim, tile_d), lambda i, k: (0, k)),
                pl.BlockSpec((1, tile_d), lambda i, k: (0, k)),
                pl.BlockSpec((tile_d, hidden_dim), lambda i, k: (k, 0)),
                pl.BlockSpec((1, hidden_dim), lambda i, k: (0, 0)),
            ],
            out_specs=pl.BlockSpec((tile_m, hidden_dim), lambda i, k: (i, 0)),
            scratch_shapes=[pltpu.VMEM((tile_m, hidden_dim), jnp.float32)],
        ),
        compiler_params=pltpu.CompilerParams(
            dimension_semantics=("parallel", "arbitrary"),
            vmem_limit_bytes=vmem_limit,
        ),
        cost_estimate=cost,
    )(x2, w1, b1_2d, w2, b2_2d)

    return out.reshape(*lead_shape, hidden_dim)


def init_mlp_params(key, hidden_dim, mlp_dim, dtype=jnp.float32):
    """Deterministic init mimicking nn.Linear default (U[-1/sqrt(fan_in), 1/sqrt(fan_in)])."""
    k1, k2, k3, k4 = jax.random.split(key, 4)
    bound1 = 1.0 / math.sqrt(hidden_dim)
    bound2 = 1.0 / math.sqrt(mlp_dim)
    w1 = jax.random.uniform(k1, (hidden_dim, mlp_dim), dtype, -bound1, bound1)
    b1 = jax.random.uniform(k2, (mlp_dim,), dtype, -bound1, bound1)
    w2 = jax.random.uniform(k3, (mlp_dim, hidden_dim), dtype, -bound2, bound2)
    b2 = jax.random.uniform(k4, (hidden_dim,), dtype, -bound2, bound2)
    return w1, b1, w2, b2


def mlp_block_ref(x, w1, b1, w2, b2):
    h = x @ w1 + b1
    h = jax.nn.gelu(h, approximate=False)
    return h @ w2 + b2


if __name__ == "__main__":
    key = jax.random.PRNGKey(0)
    kx1, kp1, kx2, kp2, kx3, kp3 = jax.random.split(key, 6)

    # Case 1: small module-sized shapes (single D chunk, two row tiles).
    b, s, h, d = 2, 8, 32, 64
    x = jax.random.normal(kx1, (b, s, h), jnp.float32)
    w1, b1, w2, b2 = init_mlp_params(kp1, h, d)
    out = jax.block_until_ready(mlp_block(x, w1, b1, w2, b2))
    ref = mlp_block_ref(x, w1, b1, w2, b2)
    assert out.shape == x.shape and out.dtype == x.dtype
    assert jnp.allclose(out, ref, atol=1e-4, rtol=1e-4), \
        float(jnp.max(jnp.abs(out - ref)))

    # Case 2: exercises the mlp_dim reduction axis (tile_d=128 -> 4 chunks)
    # and the 2-way row split (m=400 -> tile_m=200, grid=(2, 4)).
    b, s, h, d = 4, 100, 128, 512
    x = jax.random.normal(kx2, (b, s, h), jnp.float32)
    w1, b1, w2, b2 = init_mlp_params(kp2, h, d)
    out = jax.block_until_ready(mlp_block(x, w1, b1, w2, b2, tile_d=128))
    ref = mlp_block_ref(x, w1, b1, w2, b2)
    assert out.shape == x.shape and out.dtype == x.dtype
    assert jnp.allclose(out, ref, atol=1e-3, rtol=1e-3), \
        float(jnp.max(jnp.abs(out - ref)))

    # Case 3: ragged last row tile without any wrapper-side padding
    # (m=111 -> tile_m=56, blocks 56+55), D chunking, non-128 hidden_dim.
    b, s, h, d = 3, 37, 96, 384
    x = jax.random.normal(kx3, (b, s, h), jnp.float32)
    w1, b1, w2, b2 = init_mlp_params(kp3, h, d)
    out = jax.block_until_ready(mlp_block(x, w1, b1, w2, b2, tile_d=128))
    ref = mlp_block_ref(x, w1, b1, w2, b2)
    assert out.shape == x.shape and out.dtype == x.dtype
    assert jnp.allclose(out, ref, atol=1e-3, rtol=1e-3), \
        float(jnp.max(jnp.abs(out - ref)))

    print("KERNEL_OK")
</pallas_src>

<mosaic_0001>
module attributes {stable_mosaic.version = 11 : i64} {
  func.func @_mlp_block_kernel(%arg0: i32, %arg1: i32, %arg2: memref<8x32xf32, #tpu.memory_space<vmem>>, %arg3: memref<32x64xf32, #tpu.memory_space<vmem>>, %arg4: memref<1x64xf32, #tpu.memory_space<vmem>>, %arg5: memref<64x32xf32, #tpu.memory_space<vmem>>, %arg6: memref<1x32xf32, #tpu.memory_space<vmem>>, %arg7: memref<8x32xf32, #tpu.memory_space<vmem>>, %arg8: memref<8x32xf32, #tpu.memory_space<vmem>>) attributes {dimension_semantics = [#tpu.dimension_semantics<parallel>, #tpu.dimension_semantics<arbitrary>], iteration_bounds = array<i64: 2, 1>, scalar_prefetch = 0 : i64, scratch_operands = 1 : i64, tpu.core_type = #tpu.core_type<tc>, window_params = [{transform_indices = @transform_0, window_bounds = array<i64: 8, 32>}, {transform_indices = @transform_1, window_bounds = array<i64: 32, 64>}, {transform_indices = @transform_2, window_bounds = array<i64: 1, 64>}, {transform_indices = @transform_3, window_bounds = array<i64: 64, 32>}, {pipeline_mode = #tpu.pipeline_mode<synchronous>, transform_indices = @transform_4, window_bounds = array<i64: 1, 32>}, {transform_indices = @transform_5, window_bounds = array<i64: 8, 32>}]} {
    %c0_i32 = arith.constant 0 : i32
    %0 = arith.cmpi eq, %arg1, %c0_i32 : i32
    %1 = arith.extui %0 : i1 to i32
    %c0_i32_0 = arith.constant 0 : i32
    %2 = arith.cmpi ne, %1, %c0_i32_0 : i32
    scf.if %2 {
      %cst_18 = arith.constant 0.000000e+00 : f32
      %25 = vector.broadcast %cst_18 : f32 to vector<8x32xf32>
      %c0_19 = arith.constant 0 : index
      %c0_20 = arith.constant 0 : index
      %26 = vector.load %arg8[%c0_19, %c0_20] : memref<8x32xf32, #tpu.memory_space<vmem>>, vector<8x32xf32>
      tpu.vector_store %arg8[%c0_19, %c0_20], %25 {strides = array<i32>} : memref<8x32xf32, #tpu.memory_space<vmem>>, vector<8x32xf32>,
    } else {
    }
    %c0 = arith.constant 0 : index
    %c0_1 = arith.constant 0 : index
    %3 = vector.load %arg2[%c0, %c0_1] : memref<8x32xf32, #tpu.memory_space<vmem>>, vector<8x32xf32>
    %c0_2 = arith.constant 0 : index
    %c0_3 = arith.constant 0 : index
    %4 = vector.load %arg3[%c0_2, %c0_3] : memref<32x64xf32, #tpu.memory_space<vmem>>, vector<32x64xf32>
    %cst = arith.constant dense<0.000000e+00> : vector<8x64xf32>
    %5 = tpu.matmul %3, %4, %cst {dimension_numbers = #tpu.dot_dimension_numbers<[1], [0], [0], [1], [0, 0, 1, 1], [], []>} : vector<8x32xf32>, vector<32x64xf32>, vector<8x64xf32> -> vector<8x64xf32>
    %c0_4 = arith.constant 0 : index
    %c0_5 = arith.constant 0 : index
    %6 = vector.load %arg4[%c0_4, %c0_5] : memref<1x64xf32, #tpu.memory_space<vmem>>, vector<1x64xf32>
    %7 = vector.broadcast %6 : vector<1x64xf32> to vector<8x64xf32>
    %8 = arith.addf %5, %7 : vector<8x64xf32>
    %cst_6 = arith.constant 5.000000e-01 : f32
    %9 = vector.broadcast %cst_6 : f32 to vector<8x64xf32>
    %10 = arith.mulf %9, %8 : vector<8x64xf32>
    %cst_7 = arith.constant 0.707106769 : f32
    %11 = vector.broadcast %cst_7 : f32 to vector<8x64xf32>
    %12 = arith.mulf %8, %11 : vector<8x64xf32>
    %13 = math.erf %12 : vector<8x64xf32>
    %cst_8 = arith.constant 1.000000e+00 : f32
    %14 = vector.broadcast %cst_8 : f32 to vector<8x64xf32>
    %15 = arith.addf %14, %13 : vector<8x64xf32>
    %16 = arith.mulf %10, %15 : vector<8x64xf32>
    %c0_9 = arith.constant 0 : index
    %c0_10 = arith.constant 0 : index
    %17 = vector.load %arg8[%c0_9, %c0_10] : memref<8x32xf32, #tpu.memory_space<vmem>>, vector<8x32xf32>
    %c0_11 = arith.constant 0 : index
    %c0_12 = arith.constant 0 : index
    %18 = vector.load %arg5[%c0_11, %c0_12] : memref<64x32xf32, #tpu.memory_space<vmem>>, vector<64x32xf32>
    %cst_13 = arith.constant dense<0.000000e+00> : vector<8x32xf32>
    %19 = tpu.matmul %16, %18, %cst_13 {dimension_numbers = #tpu.dot_dimension_numbers<[1], [0], [0], [1], [0, 0, 1, 1], [], []>} : vector<8x64xf32>, vector<64x32xf32>, vector<8x32xf32> -> vector<8x32xf32>
    %20 = arith.addf %17, %19 : vector<8x32xf32>
    %c0_14 = arith.constant 0 : index
    %c0_15 = arith.constant 0 : index
    %21 = vector.load %arg8[%c0_14, %c0_15] : memref<8x32xf32, #tpu.memory_space<vmem>>, vector<8x32xf32>
    tpu.vector_store %arg8[%c0_14, %c0_15], %20 {strides = array<i32>} : memref<8x32xf32, #tpu.memory_space<vmem>>, vector<8x32xf32>,
    %c0_i32_16 = arith.constant 0 : i32
    %22 = arith.cmpi eq, %arg1, %c0_i32_16 : i32
    %23 = arith.extui %22 : i1 to i32
    %c0_i32_17 = arith.constant 0 : i32
    %24 = arith.cmpi ne, %23, %c0_i32_17 : i32
    scf.if %24 {
      %c0_18 = arith.constant 0 : index
      %c0_19 = arith.constant 0 : index
      %25 = vector.load %arg8[%c0_18, %c0_19] : memref<8x32xf32, #tpu.memory_space<vmem>>, vector<8x32xf32>
      %c0_20 = arith.constant 0 : index
      %c0_21 = arith.constant 0 : index
      %26 = vector.load %arg6[%c0_20, %c0_21] : memref<1x32xf32, #tpu.memory_space<vmem>>, vector<1x32xf32>
      %27 = vector.broadcast %26 : vector<1x32xf32> to vector<8x32xf32>
      %28 = arith.addf %25, %27 : vector<8x32xf32>
      %c0_22 = arith.constant 0 : index
      %c0_23 = arith.constant 0 : index
      %29 = vector.load %arg7[%c0_22, %c0_23] : memref<8x32xf32, #tpu.memory_space<vmem>>, vector<8x32xf32>
      tpu.vector_store %arg7[%c0_22, %c0_23], %28 {strides = array<i32>} : memref<8x32xf32, #tpu.memory_space<vmem>>, vector<8x32xf32>,
    } else {
    }
    return
  }
  func.func @transform_0(%arg0: i32, %arg1: i32) -> (i32, i32) {
    %c0_i32 = arith.constant 0 : i32
    %c0_i32_0 = arith.constant 0 : i32
    return %arg0, %c0_i32 : i32, i32
  }
  func.func @transform_1(%arg0: i32, %arg1: i32) -> (i32, i32) {
    %c0_i32 = arith.constant 0 : i32
    %c0_i32_0 = arith.constant 0 : i32
    return %c0_i32, %arg1 : i32, i32
  }
  func.func @transform_2(%arg0: i32, %arg1: i32) -> (i32, i32) {
    %c0_i32 = arith.constant 0 : i32
    %c0_i32_0 = arith.constant 0 : i32
    return %c0_i32, %arg1 : i32, i32
  }
  func.func @transform_3(%arg0: i32, %arg1: i32) -> (i32, i32) {
    %c0_i32 = arith.constant 0 : i32
    %c0_i32_0 = arith.constant 0 : i32
    return %arg1, %c0_i32 : i32, i32
  }
  func.func @transform_4(%arg0: i32, %arg1: i32) -> (i32, i32) {
    %c0_i32 = arith.constant 0 : i32
    %c0_i32_0 = arith.constant 0 : i32
    %c0_i32_1 = arith.constant 0 : i32
    return %c0_i32, %c0_i32_0 : i32, i32
  }
  func.func @transform_5(%arg0: i32, %arg1: i32) -> (i32, i32) {
    %c0_i32 = arith.constant 0 : i32
    %c0_i32_0 = arith.constant 0 : i32
    return %arg0, %c0_i32 : i32, i32
  }
}

</mosaic_0001>

<llo_original>
// kernel: tpu_custom_call.1
$region0: #{tpu_custom_call.1}
  #allocation0 [shape = 'u32[]', space=smem, size = 0x4, offset = 0x4, fixed_abs, tag = 'smem constant byte address 0x4 - core index']
  #allocation1 [shape = 'u32[72,128]{1,0:T(1,128)}', space=vmem, size = 0x9000, scoped, tag = 'internal scratch']
  #allocation2 [shape = 'f32[8,32]{1,0:T(8,128)}', space=vmem, size = 0x1000, scoped, tag = 'scratch operand']
  %s0 = inlined_call_operand.vmem [shape: f32[16,32], index: 0, kind: input, shape index: {}]
  %s1 = inlined_call_operand.vmem [shape: f32[32,64], index: 1, kind: input, shape index: {}]
  %s2 = inlined_call_operand.vmem [shape: f32[1,64], index: 2, kind: input, shape index: {}]
  %s3 = inlined_call_operand.vmem [shape: f32[64,32], index: 3, kind: input, shape index: {}]
  %s4 = inlined_call_operand.vmem [shape: f32[1,32], index: 4, kind: input, shape index: {}]
  %s5 = inlined_call_operand.hbm [shape: f32[16,32], index: 5, kind: output, shape index: {}]
  %s6 = sld [smem:[#allocation0]]
  $region61: #{tpu_custom_call.1} parent=0
    _
  %s8 = ssub.s32 1, %s6
  %s9 = scalar_select 0, %s8, %s6
  $region1: #{tpu_custom_call.1} parent=0
    #allocation3 [shape = 'u8[8192]{0}', space=vmem, size = 0x2000, scoped, tag = 'output window, operand 0']
    #allocation4 [shape = 's32[2]{0}', space=sflag, size = 0x8, scoped, tag = 'scoped memory for tpu_custom_call.1']
    %10 = vsyncpa [#allocation4], 0
    %s11 = scalar_lea.sflag [#allocation4], 1
    %12 = vsyncpa %s11, 0
    loop: start=0, step=1, limit=4
    $region2: #{tpu_custom_call.1} parent=1 // loop_pre_header
      _
    $region3: #{tpu_custom_call.1} parent=1 // loop_header
      %s14 = sphi 0, %s18
      %p15 = scmp.ge.s32.totalorder %s14, 4
      %s21 = sphi 0, %s33
      %s22 = sphi 0, %s29
      %s23 = sphi 0, %s21
      %s24 = sphi 0, %s22
      %s25 = sphi 0, %s23
      %s26 = sphi 0, %s24
      %s36 = sphi 0, %s38
      %s39 = sphi 0, %s36
      %s40 = sphi 0, %s39
      %s56 = sphi 0, %s40
      %s62 = sphi 0, %s64
      %s65 = sphi 0, %s62
      %s66 = sphi 0, %s65
      %s82 = sphi 0, %s66
      %s88 = sphi 0, %s90
      %s91 = sphi 0, %s88
      %s92 = sphi 0, %s91
      %s108 = sphi 0, %s92
      %s114 = sphi 0, %s116
      %s117 = sphi 0, %s114
      %s118 = sphi 0, %s117
      %s134 = sphi 0, %s118
      %s138 = sphi 0, %s138
      %s140 = sphi 0, %s138
      %s141 = sphi 0, %s140
      %s155 = sphi 0, %s141
      %s161 = sphi 0, %s163
      %s164 = sphi 0, %s161
      %s165 = sphi 0, %s164
      %s181 = sphi 0, %s165
    $region4: #{tpu_custom_call.1} parent=1 // loop_header_branch
      %17 = sbr.rel (%p15) target = $region8
    $region5: #{tpu_custom_call.1} parent=1 // loop_body
      %s19 = ssub.s32 %s14, 1
      %s20 = ssub.s32 %s14, 2
      %s27 = sadd.s32 1, %s22
      %p28 = scmp.ge.s32.totalorder %s27, 1
      %s29 = scalar_select %p28, 0, %s27
      %s30 = sadd.s32 1, %s21
      %s31 = scalar_select %p28, %s30, %s21
      %p32 = scmp.ge.s32.totalorder %s31, 2
      %s33 = scalar_select %p32, 0, %s31
      %s34 = ssub.s32 %s21, %s33
      %p35 = scmp.eq.s32.totalorder %s34, 0
      %s37 = sadd.s32 %s36, 1
      %s38 = scalar_select %p35, %s36, %s37
      %p41 = pneg %p35
      %p42 = scmp.eq.s32.totalorder %s14, 1
      %p43 = por %p41, %p42
      %p44 = scmp.ne.s32.totalorder %s36, %s39
      %p45 = scmp.eq.s32.totalorder %s14, 0
      %p46 = por %p44, %p45
      %p47 = scmp.ne.s32.totalorder %s36, %s39
      %p48 = scmp.eq.s32.totalorder %s19, 1
      %p49 = por %p47, %p48
      %p50 = scmp.ne.s32.totalorder %s39, %s40
      %p51 = scmp.eq.s32.totalorder %s19, 0
      %p52 = por %p50, %p51
      %p53 = scmp.ne.s32.totalorder %s39, %s40
      %p54 = scmp.eq.s32.totalorder %s20, 1
      %p55 = por %p53, %p54
      %p57 = scmp.ne.s32.totalorder %s40, %s56
      %p58 = scmp.eq.s32.totalorder %s20, 0
      %p59 = por %p57, %p58
      %s60 = ssub.s32 %s22, %s29
      %p61 = scmp.eq.s32.totalorder %s60, 0
      %s63 = sadd.s32 %s62, 1
      %s64 = scalar_select %p61, %s62, %s63
      %p67 = pneg %p61
      %p68 = scmp.eq.s32.totalorder %s14, 1
      %p69 = por %p67, %p68
      %p70 = scmp.ne.s32.totalorder %s62, %s65
      %p71 = scmp.eq.s32.totalorder %s14, 0
      %p72 = por %p70, %p71
      %p73 = scmp.ne.s32.totalorder %s62, %s65
      %p74 = scmp.eq.s32.totalorder %s19, 1
      %p75 = por %p73, %p74
      %p76 = scmp.ne.s32.totalorder %s65, %s66
      %p77 = scmp.eq.s32.totalorder %s19, 0
      %p78 = por %p76, %p77
      %p79 = scmp.ne.s32.totalorder %s65, %s66
      %p80 = scmp.eq.s32.totalorder %s20, 1
      %p81 = por %p79, %p80
      %p83 = scmp.ne.s32.totalorder %s66, %s82
      %p84 = scmp.eq.s32.totalorder %s20, 0
      %p85 = por %p83, %p84
      %s86 = ssub.s32 %s22, %s29
      %p87 = scmp.eq.s32.totalorder %s86, 0
      %s89 = sadd.s32 %s88, 1
      %s90 = scalar_select %p87, %s88, %s89
      %p93 = pneg %p87
      %p94 = scmp.eq.s32.totalorder %s14, 1
      %p95 = por %p93, %p94
      %p96 = scmp.ne.s32.totalorder %s88, %s91
      %p97 = scmp.eq.s32.totalorder %s14, 0
      %p98 = por %p96, %p97
      %p99 = scmp.ne.s32.totalorder %s88, %s91
      %p100 = scmp.eq.s32.totalorder %s19, 1
      %p101 = por %p99, %p100
      %p102 = scmp.ne.s32.totalorder %s91, %s92
      %p103 = scmp.eq.s32.totalorder %s19, 0
      %p104 = por %p102, %p103
      %p105 = scmp.ne.s32.totalorder %s91, %s92
      %p106 = scmp.eq.s32.totalorder %s20, 1
      %p107 = por %p105, %p106
      %p109 = scmp.ne.s32.totalorder %s92, %s108
      %p110 = scmp.eq.s32.totalorder %s20, 0
      %p111 = por %p109, %p110
      %s112 = ssub.s32 %s22, %s29
      %p113 = scmp.eq.s32.totalorder %s112, 0
      %s115 = sadd.s32 %s114, 1
      %s116 = scalar_select %p113, %s114, %s115
      %p119 = pneg %p113
      %p120 = scmp.eq.s32.totalorder %s14, 1
      %p121 = por %p119, %p120
      %p122 = scmp.ne.s32.totalorder %s114, %s117
      %p123 = scmp.eq.s32.totalorder %s14, 0
      %p124 = por %p122, %p123
      %p125 = scmp.ne.s32.totalorder %s114, %s117
      %p126 = scmp.eq.s32.totalorder %s19, 1
      %p127 = por %p125, %p126
      %p128 = scmp.ne.s32.totalorder %s117, %s118
      %p129 = scmp.eq.s32.totalorder %s19, 0
      %p130 = por %p128, %p129
      %p131 = scmp.ne.s32.totalorder %s117, %s118
      %p132 = scmp.eq.s32.totalorder %s20, 1
      %p133 = por %p131, %p132
      %p135 = scmp.ne.s32.totalorder %s118, %s134
      %p136 = scmp.eq.s32.totalorder %s20, 0
      %p137 = por %p135, %p136
      %s139 = sadd.s32 %s138, 1
      %p142 = scmp.eq.s32.totalorder %s14, 1
      %p143 = scmp.ne.s32.totalorder %s138, %s140
      %p144 = scmp.eq.s32.totalorder %s14, 0
      %p145 = por %p143, %p144
      %p146 = scmp.ne.s32.totalorder %s138, %s140
      %p147 = scmp.eq.s32.totalorder %s19, 1
      %p148 = por %p146, %p147
      %p149 = scmp.ne.s32.totalorder %s140, %s141
      %p150 = scmp.eq.s32.totalorder %s19, 0
      %p151 = por %p149, %p150
      %p152 = scmp.ne.s32.totalorder %s140, %s141
      %p153 = scmp.eq.s32.totalorder %s20, 1
      %p154 = por %p152, %p153
      %p156 = scmp.ne.s32.totalorder %s141, %s155
      %p157 = scmp.eq.s32.totalorder %s20, 0
      %p158 = por %p156, %p157
      %s159 = ssub.s32 %s21, %s33
      %p160 = scmp.eq.s32.totalorder %s159, 0
      %s162 = sadd.s32 %s161, 1
      %s163 = scalar_select %p160, %s161, %s162
      %p166 = pneg %p160
      %p167 = scmp.eq.s32.totalorder %s14, 1
      %p168 = por %p166, %p167
      %p169 = scmp.ne.s32.totalorder %s161, %s164
      %p170 = scmp.eq.s32.totalorder %s14, 0
      %p171 = por %p169, %p170
      %p172 = scmp.ne.s32.totalorder %s161, %s164
      %p173 = scmp.eq.s32.totalorder %s19, 1
      %p174 = por %p172, %p173
      %p175 = scmp.ne.s32.totalorder %s164, %s165
      %p176 = scmp.eq.s32.totalorder %s19, 0
      %p177 = por %p175, %p176
      %p178 = scmp.ne.s32.totalorder %s164, %s165
      %p179 = scmp.eq.s32.totalorder %s20, 1
      %p180 = por %p178, %p179
      %p182 = scmp.ne.s32.totalorder %s165, %s181
      %p183 = scmp.eq.s32.totalorder %s20, 0
      %p184 = por %p182, %p183
      %p185 = scmp.le.s32.totalorder 1, %s14
      %p186 = scmp.lt.s32.totalorder %s14, 3
      %p187 = pnand %p185, %p186
      %p188 = pneg %p187
      // Predicated region
      $region9: #{tpu_custom_call.1} parent=5 // pred_check
        _
      $region10: #{tpu_custom_call.1} parent=5 // pred_check_branch
        %190 = sbr.rel (%p187) target = $region12
      $region11: #{tpu_custom_call.1} parent=5 // pred_region
        %s191 = ssub.s32 %s14, 1
        // Predicated region
        $region13: #{tpu_custom_call.1} parent=11 // pred_check
          %p192 = pneg %p78
        $region14: #{tpu_custom_call.1} parent=11 // pred_check_branch
          %194 = sbr.rel (%p192) target = $region16
        $region15: #{tpu_custom_call.1} parent=11 // pred_region
          %p195 = scmp.lt.s32.totalorder %s24, 0
          %s196 = scalar_select %p195, %s24, 0
          %s197 = smul.addr %s196, 8
          %s198 = scalar_lea.vmem %s1, %s197
        $region16: #{tpu_custom_call.1} parent=11 // pred_fallthru
          _
        // Predicated region
        $region17: #{tpu_custom_call.1} parent=11 // pred_check
          %p199 = pneg %p104
        $region18: #{tpu_custom_call.1} parent=11 // pred_check_branch
          %201 = sbr.rel (%p199) target = $region20
        $region19: #{tpu_custom_call.1} parent=11 // pred_region
          %p202 = scmp.lt.s32.totalorder %s24, 0
          %s203 = scalar_select %p202, %s24, 0
          %s204 = scalar_lea.vmem %s2, %s203
        $region20: #{tpu_custom_call.1} parent=11 // pred_fallthru
          _
        // Predicated region
        $region21: #{tpu_custom_call.1} parent=11 // pred_check
          %p205 = pneg %p130
        $region22: #{tpu_custom_call.1} parent=11 // pred_check_branch
          %207 = sbr.rel (%p205) target = $region24
        $region23: #{tpu_custom_call.1} parent=11 // pred_region
          %s208 = smul.u32 8, %s24
          %p209 = scmp.lt.s32.totalorder %s208, 7
          %s210 = scalar_select %p209, %s208, 7
          %s211 = smul.addr %s210, 8
          %s212 = scalar_lea.vmem %s3, %s211
          %s213 = smul.u32 8, %s24
        $region24: #{tpu_custom_call.1} parent=11 // pred_fallthru
          _
        // Predicated region
        $region25: #{tpu_custom_call.1} parent=11 // pred_check
          %p214 = pneg %p151
        $region26: #{tpu_custom_call.1} parent=11 // pred_check_branch
          %216 = sbr.rel (%p214) target = $region28
        $region27: #{tpu_custom_call.1} parent=11 // pred_region
          _
        $region28: #{tpu_custom_call.1} parent=11 // pred_fallthru
          _
      $region12: #{tpu_custom_call.1} parent=5 // pred_fallthru
        _
      %p217 = scmp.lt.s32.totalorder %s14, 2
      // Predicated region
      $region29: #{tpu_custom_call.1} parent=5 // pred_check
        %p218 = pneg %p217
      $region30: #{tpu_custom_call.1} parent=5 // pred_check_branch
        %220 = sbr.rel (%p218) target = $region32
      $region31: #{tpu_custom_call.1} parent=5 // pred_region
        // Predicated region
        $region33: #{tpu_custom_call.1} parent=31 // pred_check
          %p221 = pneg %p46
        $region34: #{tpu_custom_call.1} parent=31 // pred_check_branch
          %223 = sbr.rel (%p221) target = $region36
        $region35: #{tpu_custom_call.1} parent=31 // pred_region
          %p224 = scmp.lt.s32.totalorder %s21, 1
          %s225 = scalar_select %p224, %s21, 1
          %s226 = smul.addr %s225, 8
          %s227 = scalar_lea.vmem %s0, %s226
        $region36: #{tpu_custom_call.1} parent=31 // pred_fallthru
          _
      $region32: #{tpu_custom_call.1} parent=5 // pred_fallthru
        _
      %p228 = scmp.le.s32.totalorder 1, %s14
      %p229 = scmp.lt.s32.totalorder %s14, 3
      %p230 = pnand %p228, %p229
      %p231 = pneg %p230
      // Predicated region
      $region37: #{tpu_custom_call.1} parent=5 // pred_check
        _
      $region38: #{tpu_custom_call.1} parent=5 // pred_check_branch
        %233 = sbr.rel (%p230) target = $region40
      $region39: #{tpu_custom_call.1} parent=5 // pred_region
        %s234 = ssub.s32 %s14, 1
        %p235 = scmp.lt.s32.totalorder %s23, 1
        %s236 = scalar_select %p235, %s23, 1
        %s237 = smul.addr %s236, 8
        %s238 = scalar_lea.vmem %s0, %s237
        %p239 = pneg %p52
        %p240 = pneg %p49
        %p241 = scmp.lt.s32.totalorder %s24, 0
        %s242 = scalar_select %p241, %s24, 0
        %s243 = smul.addr %s242, 8
        %s244 = scalar_lea.vmem %s1, %s243
        %p245 = pneg %p78
        %p246 = pneg %p75
        %p247 = scmp.lt.s32.totalorder %s24, 0
        %s248 = scalar_select %p247, %s24, 0
        %s249 = scalar_lea.vmem %s2, %s248
        %p250 = pneg %p104
        %p251 = pneg %p101
        %s252 = smul.u32 8, %s24
        %p253 = scmp.lt.s32.totalorder %s252, 7
        %s254 = scalar_select %p253, %s252, 7
        %s255 = smul.addr %s254, 8
        %s256 = scalar_lea.vmem %s3, %s255
        %p257 = pneg %p130
        %p258 = pneg %p127
        %p259 = pneg %p151
        %p260 = pneg %p148
        %p261 = pneg %p177
        %p262 = pneg %p174
        %s263 = sand.u32 %s164, 1
        %s264 = scalar_lea.sflag [#allocation4], %s263
        %s265 = sand.u32 %s164, 1
        %s266 = smul.addr %s265, 8
        %s267 = scalar_lea.vmem [#allocation3], %s266
        %p268 = scmp.lt.s32.totalorder %s23, 1
        %s269 = scalar_select %p268, %s23, 1
        %s270 = smul.addr %s269, 8
        %s271 = scalar_lea.vmem %s0, %s270
        %p272 = scmp.lt.s32.totalorder %s24, 0
        %s273 = scalar_select %p272, %s24, 0
        %s274 = smul.addr %s273, 8
        %s275 = scalar_lea.vmem %s1, %s274
        %p276 = scmp.lt.s32.totalorder %s24, 0
        %s277 = scalar_select %p276, %s24, 0
        %s278 = scalar_lea.vmem %s2, %s277
        %s279 = smul.u32 8, %s24
        %p280 = scmp.lt.s32.totalorder %s279, 7
        %s281 = scalar_select %p280, %s279, 7
        %s282 = smul.addr %s281, 8
        %s283 = scalar_lea.vmem %s3, %s282
        %s284 = smul.u32 8, %s24
        %p285 = scmp.eq.s32.totalorder %s24, 0
        // Predicated region
        $region41: #{tpu_custom_call.1} parent=39 // pred_check
          %p286 = pneg %p285
        $region42: #{tpu_custom_call.1} parent=39 // pred_check_branch
          %288 = sbr.rel (%p286) target = $region44
        $region43: #{tpu_custom_call.1} parent=39 // pred_region
          %vm289 = vcmask 261120
          %290 = vst.msk [vmem:[#allocation2] sm:$0xff] %vm289, 0.0
        $region44: #{tpu_custom_call.1} parent=39 // pred_fallthru
          _
        %v291 = vld [vmem:[%s271] sm:$0xff]
        %v292 = vld [vmem:[%s275] sm:$0xff]
        %v293 = vld [vmem:[%s275 + $0x8] sm:$0xff]
        %v294 = vld [vmem:[%s275 + $0x10] sm:$0xff]
        %v295 = vld [vmem:[%s275 + $0x18] sm:$0xff]
        %v296 = vld [vmem:[%s278] sm:$0x1]
        %v298 = vperm.slane %v296, 0
        %vm300 = vcmask 261120
        %v302 = vsel %vm300, %v291, 0
        %304 = vmatpush.msra.mxu0 0.0
        %305 = vmatpush.msra.mxu0 0.0
        %306 = vmatpush.msra.mxu0 0.0
        %307 = vmatpush.msra.mxu0 0.0
        %308 = vmatpush.msra.mxu0 0.0
        %309 = vmatpush.msra.mxu0 0.0
        %310 = vmatpush.msra.mxu0 0.0
        %311 = vmatpush.msra.mxu0 0.0
        %312 = vmatpush.msra.mxu0 0.0
        %313 = vmatpush.msra.mxu0 0.0
        %314 = vmatpush.msra.mxu0 0.0
        %315 = vmatpush.msra.mxu0 0.0
        %316 = vmatpush.msra.mxu0 %v295
        %317 = vmatpush.msra.mxu0 %v294
        %318 = vmatpush.msra.mxu0 %v293
        %319 = vmatpush.msra.mxu0 %v292
        %320 = vmatmul.f32.gmra.mxu0 %v302
        %v321 = vpop.f32.mrf.mxu0
        %v322 = vadd.f32 %v298, %v321
        %323 = vdwg.mxu0
        %v324 = vmul.f32 %v322, 0.5
        %v325 = vmul.f32 %v322, 0.70710677
        %v326 = vmul.f32 %v325, %v325
        %v327 = vmin.f32 16.0, %v326
        %v328 = vmul.f32 %v327, 2.1237322e-06
        %v329 = vadd.f32 %v328, 0.00028619796
        %v330 = vmul.f32 %v327, %v329
        %v331 = vadd.f32 %v330, 0.0036580483
        %v332 = vmul.f32 %v327, %v331
        %v333 = vadd.f32 %v332, 0.05243302
        %v334 = vmul.f32 %v327, %v333
        %v335 = vadd.f32 %v334, 0.18741608
        %v336 = vmul.f32 %v327, %v335
        %v337 = vadd.f32 %v336, 1.1283791
        %v338 = vmul.f32 %v325, %v337
        %v339 = vmul.f32 %v327, 3.8918573e-05
        %v340 = vadd.f32 %v339, 0.001143296
        %v341 = vmul.f32 %v327, %v340
        %v342 = vadd.f32 %v341, 0.014752088
        %v343 = vmul.f32 %v327, %v342
        %v344 = vadd.f32 %v343, 0.112945676
        %v345 = vmul.f32 %v327, %v344
        %v346 = vadd.f32 %v345, 0.4994258
        %v347 = vmul.f32 %v327, %v346
        %v348 = vadd.f32 %v347, 1.0
        %v349 = vrcp.pop %v348
        %v350 = vmul.f32 %v348, %v349
        %v351 = vsub.f32 1.0, %v350
        %v352 = vmul.f32 %v349, %v351
        %v353 = vadd.f32 %v349, %v352
        %vm354 = vweird.f32 %v348
        %vm355 = vweird.f32 %v349
        %vm356 = vmor %vm354, %vm355
        %v357 = vsel %vm356, %v349, %v353
        %v358 = vand.u32 2147483647, %v348
        %vm359 = vcmp.eq.f32.partialorder %v358, 8.507059e+37
        %v360 = vand.u32 %v348, 2147483648
        %v361 = vor.u32 1.1754944e-38, %v360
        %v362 = vsel %vm359, %v361, %v357
        %v363 = vmul.f32 %v338, %v362
        %v364 = vmin.f32 %v363, 1.0
        %v365 = vmax.f32 %v364, -1.0
        %v366 = vadd.f32 %v365, 1.0
        %v367 = vmul.f32 %v324, %v366
        %v368 = vld [vmem:[#allocation2] sm:$0xff]
        %v369 = vld [vmem:[%s283] sm:$0xff]
        %v370 = vld [vmem:[%s283 + $0x8] sm:$0xff]
        %v371 = vld [vmem:[%s283 + $0x10] sm:$0xff]
        %v372 = vld [vmem:[%s283 + $0x18] sm:$0xff]
        %v373 = vld [vmem:[%s283 + $0x20] sm:$0xff]
        %v374 = vld [vmem:[%s283 + $0x28] sm:$0xff]
        %v375 = vld [vmem:[%s283 + $0x30] sm:$0xff]
        %v376 = vld [vmem:[%s283 + $0x38] sm:$0xff]
        %vm377 = vcmask 523264
        %v379 = vsel %vm377, %v367, 0
        %381 = vmatpush.msra.mxu0 0.0
        %382 = vmatpush.msra.mxu0 0.0
        %383 = vmatpush.msra.mxu0 0.0
        %384 = vmatpush.msra.mxu0 0.0
        %385 = vmatpush.msra.mxu0 0.0
        %386 = vmatpush.msra.mxu0 0.0
        %387 = vmatpush.msra.mxu0 0.0
        %388 = vmatpush.msra.mxu0 0.0
        %389 = vmatpush.msra.mxu0 %v376
        %390 = vmatpush.msra.mxu0 %v375
        %391 = vmatpush.msra.mxu0 %v374
        %392 = vmatpush.msra.mxu0 %v373
        %393 = vmatpush.msra.mxu0 %v372
        %394 = vmatpush.msra.mxu0 %v371
        %395 = vmatpush.msra.mxu0 %v370
        %396 = vmatpush.msra.mxu0 %v369
        %397 = vmatmul.f32.gmra.mxu0 %v379
        %v398 = vpop.f32.mrf.mxu0
        %v399 = vadd.f32 0.0, %v398
        %400 = vdwg.mxu0
        %v401 = vadd.f32 %v368, %v399
        %402 = vst.msk [vmem:[#allocation2] sm:$0xff] %vm300, %v401
        // Predicated region
        $region45: #{tpu_custom_call.1} parent=39 // pred_check
          %p403 = pneg %p285
        $region46: #{tpu_custom_call.1} parent=39 // pred_check_branch
          %405 = sbr.rel (%p403) target = $region48
        $region47: #{tpu_custom_call.1} parent=39 // pred_region
          %v406 = vld [vmem:[#allocation2] sm:$0xff]
          %v407 = vld [vmem:[%s4] sm:$0x1]
          %v409 = vperm.slane %v407, 0
          %v411 = vadd.f32 %v406, %v409
          %412 = vst.msk [vmem:[%s267] sm:$0xff] %vm300, %v411
        $region48: #{tpu_custom_call.1} parent=39 // pred_fallthru
          _
        %s413 = sand.u32 %s164, 1
        %s414 = scalar_lea.sflag [#allocation4], %s413
        %s415 = sand.u32 %s164, 1
        %s416 = smul.addr %s415, 8
        %s417 = scalar_lea.vmem [#allocation3], %s416
        // Predicated region
        $region49: #{tpu_custom_call.1} parent=39 // pred_check
          %p418 = pneg %p174
        $region50: #{tpu_custom_call.1} parent=39 // pred_check_branch
          %420 = sbr.rel (%p418) target = $region52
        $region51: #{tpu_custom_call.1} parent=39 // pred_region
          %422 = vsyncadd %s414, 0
          %s423 = smul.addr %s23, 8
          %s424 = scalar_lea.hbm %s5, %s423
          %s426 = sshll.u32 %s417, 4
          %s427 = int_to_ptr.vmem [resolvable:$true] %s426
          %s428 = sshll.u32 %s424, 4
          %s429 = int_to_ptr.hbm [resolvable:$true] %s428
          %431 = dma.vmem_to_hbm [thread:$0]  %s427, 128, %s429, %s414
        $region52: #{tpu_custom_call.1} parent=39 // pred_fallthru
          _
      $region40: #{tpu_custom_call.1} parent=5 // pred_fallthru
        _
      %p432 = scmp.le.s32.totalorder 2, %s14
      // Predicated region
      $region53: #{tpu_custom_call.1} parent=5 // pred_check
        %p433 = pneg %p432
      $region54: #{tpu_custom_call.1} parent=5 // pred_check_branch
        %435 = sbr.rel (%p433) target = $region56
      $region55: #{tpu_custom_call.1} parent=5 // pred_region
        %s436 = ssub.s32 %s14, 2
        // Predicated region
        $region57: #{tpu_custom_call.1} parent=55 // pred_check
          %p437 = pneg %p180
        $region58: #{tpu_custom_call.1} parent=55 // pred_check_branch
          %439 = sbr.rel (%p437) target = $region60
        $region59: #{tpu_custom_call.1} parent=55 // pred_region
          %s440 = sand.u32 %s165, 1
          %s441 = scalar_lea.sflag [#allocation4], %s440
          %s442 = sand.u32 %s165, 1
          %s443 = smul.addr %s442, 8
          %s444 = scalar_lea.vmem [#allocation3], %s443
          %446 = dma.done %s441, 128
        $region60: #{tpu_custom_call.1} parent=55 // pred_fallthru
          _
      $region56: #{tpu_custom_call.1} parent=5 // pred_fallthru
        _
    $region6: #{tpu_custom_call.1} parent=1 // loop_footer
      %s18 = sadd.s32 1, %s14
    $region7: #{tpu_custom_call.1} parent=1 // loop_footer_branch
      %13 = sbr.rel target = $region3
    $region8: #{tpu_custom_call.1} parent=1 // loop_exit
      _
    %447 = vsyncpa [#allocation4], 1
    %s448 = scalar_lea.sflag [#allocation4], 1
    %449 = vsyncpa %s448, 1

</llo_original>
